<compile_context>
chip_gen: v7x
topology: tpu7x:2x2x1
jax: 0.10.0
libtpu: 0.0.40
codegen_flags: <defaults>
</compile_context>

<pallas_src>
import functools

import jax
import jax.numpy as jnp
from jax.experimental import pallas as pl
from jax.experimental.pallas import tpu as pltpu

_H_ACTOR = 200
_H_CRITIC = 100
_H_TRUNK = _H_ACTOR + _H_CRITIC          # 300 (logical)
_H_TRUNK_PAD = 384                       # padded to 3*128 lanes


def _softplus(x):
    # numerically stable softplus = max(x, 0) + log1p(exp(-|x|))
    return jnp.maximum(x, 0.0) + jnp.log1p(jnp.exp(-jnp.abs(x)))


def _net_kernel(x_ref, wt_ref, bt_ref, wh_ref, bh_ref, out_ref, *, a_dim):
    x = x_ref[...]

    # Fused trunk: [a1 | c1 | 0-pad] in one MXU pass, relu6 on the (B, 384) slab.
    h = jnp.dot(x, wt_ref[...], preferred_element_type=jnp.float32) + bt_ref[...]
    h = jnp.clip(h, 0.0, 6.0)

    # Fused heads: block head weight gives
    #   cols [0, a_dim)        -> mu_lin     (from a1 rows)
    #   cols [a_dim, 2*a_dim)  -> sigma_lin  (from a1 rows)
    #   col  2*a_dim           -> values     (from c1 rows)
    #   remaining cols         -> exact zeros (padding)
    o = jnp.dot(h, wh_ref[...], preferred_element_type=jnp.float32) + bh_ref[...]

    col = jax.lax.broadcasted_iota(jnp.int32, o.shape, 1)
    mu_act = 2.0 * jnp.tanh(o)                 # EUP
    sg_act = _softplus(o) + 0.001              # EUP
    out_ref[...] = jnp.where(col < a_dim, mu_act,
                             jnp.where(col < 2 * a_dim, sg_act, o))


def pack_params(params, a_dim, n_out):
    """Fuse the five Linear layers into one (padded) trunk matrix and one head matrix."""
    s_dim = params["wa1"].shape[0]

    w_trunk = jnp.zeros((s_dim, _H_TRUNK_PAD), jnp.float32)
    w_trunk = w_trunk.at[:, :_H_ACTOR].set(params["wa1"])
    w_trunk = w_trunk.at[:, _H_ACTOR:_H_TRUNK].set(params["wc1"])

    b_trunk = jnp.zeros((1, _H_TRUNK_PAD), jnp.float32)
    b_trunk = b_trunk.at[:, :_H_ACTOR].set(params["ba1"])
    b_trunk = b_trunk.at[:, _H_ACTOR:_H_TRUNK].set(params["bc1"])

    w_head = jnp.zeros((_H_TRUNK_PAD, n_out), jnp.float32)
    w_head = w_head.at[:_H_ACTOR, :a_dim].set(params["wmu"])
    w_head = w_head.at[:_H_ACTOR, a_dim:2 * a_dim].set(params["wsg"])
    w_head = w_head.at[_H_ACTOR:_H_TRUNK, 2 * a_dim:2 * a_dim + 1].set(params["wv"])

    b_head = jnp.zeros((1, n_out), jnp.float32)
    b_head = b_head.at[:, :a_dim].set(params["bmu"])
    b_head = b_head.at[:, a_dim:2 * a_dim].set(params["bsg"])
    b_head = b_head.at[:, 2 * a_dim:2 * a_dim + 1].set(params["bv"])
    return w_trunk, b_trunk, w_head, b_head


def net_forward(x, params):
    """x: (B, s_dim) f32. params: dict of per-layer weights ([in, out]) / biases ([1, out])."""
    B, s_dim = x.shape
    a_dim = params["wmu"].shape[1]

    # Lane-dense packed output width (multiple of 128 lanes).
    n_out = max(128, ((2 * a_dim + 1 + 127) // 128) * 128)

    w_trunk, b_trunk, w_head, b_head = pack_params(params, a_dim, n_out)

    # Batch tile: whole batch at small B; large multiple-of-8 tiles otherwise.
    block_b = B
    for cand in (512, 256, 128, 64, 32, 16, 8):
        if B > cand and B % cand == 0:
            block_b = cand
            break
    grid = (B // block_b,)

    kernel = functools.partial(_net_kernel, a_dim=a_dim)

    cost = pl.CostEstimate(
        flops=2 * B * (s_dim * _H_TRUNK_PAD + _H_TRUNK_PAD * n_out),
        transcendentals=2 * B * n_out,  # tanh + exp(softplus) over the packed slab
        bytes_accessed=4 * (B * s_dim + s_dim * _H_TRUNK_PAD + _H_TRUNK_PAD
                            + _H_TRUNK_PAD * n_out + n_out + B * n_out),
    )

    out = pl.pallas_call(
        kernel,
        out_shape=jax.ShapeDtypeStruct((B, n_out), jnp.float32),
        grid=grid,
        in_specs=[
            pl.BlockSpec((block_b, s_dim), lambda i: (i, 0)),            # x tile (streams)
            pl.BlockSpec((s_dim, _H_TRUNK_PAD), lambda i: (0, 0)),       # W_trunk (resident)
            pl.BlockSpec((1, _H_TRUNK_PAD), lambda i: (0, 0)),           # b_trunk (resident)
            pl.BlockSpec((_H_TRUNK_PAD, n_out), lambda i: (0, 0)),       # W_head (resident)
            pl.BlockSpec((1, n_out), lambda i: (0, 0)),                  # b_head (resident)
        ],
        out_specs=pl.BlockSpec((block_b, n_out), lambda i: (i, 0)),
        compiler_params=pltpu.CompilerParams(
            dimension_semantics=("parallel",),
        ),
        cost_estimate=cost,
    )(x, w_trunk, b_trunk, w_head, b_head)

    mu = out[:, :a_dim]
    sigma = out[:, a_dim:2 * a_dim]
    values = out[:, 2 * a_dim:2 * a_dim + 1]
    return mu, sigma, values


def init_params(key, s_dim, a_dim):
    """Deterministic normal(0, 0.1) weights / zero biases (mirrors set_init)."""
    ks = jax.random.split(key, 5)

    def lin(k, n_in, n_out):
        w = 0.1 * jax.random.normal(k, (n_in, n_out), dtype=jnp.float32)
        b = jnp.zeros((1, n_out), dtype=jnp.float32)
        return w, b

    wa1, ba1 = lin(ks[0], s_dim, _H_ACTOR)
    wmu, bmu = lin(ks[1], _H_ACTOR, a_dim)
    wsg, bsg = lin(ks[2], _H_ACTOR, a_dim)
    wc1, bc1 = lin(ks[3], s_dim, _H_CRITIC)
    wv, bv = lin(ks[4], _H_CRITIC, 1)
    return dict(wa1=wa1, ba1=ba1, wmu=wmu, bmu=bmu, wsg=wsg, bsg=bsg,
                wc1=wc1, bc1=bc1, wv=wv, bv=bv)


def net_forward_ref(x, p):
    a1 = jnp.clip(x @ p["wa1"] + p["ba1"], 0.0, 6.0)
    mu = 2.0 * jnp.tanh(a1 @ p["wmu"] + p["bmu"])
    sigma = jax.nn.softplus(a1 @ p["wsg"] + p["bsg"]) + 0.001
    c1 = jnp.clip(x @ p["wc1"] + p["bc1"], 0.0, 6.0)
    values = c1 @ p["wv"] + p["bv"]
    return mu, sigma, values


if __name__ == "__main__":
    key = jax.random.PRNGKey(0)
    k_x, k_p = jax.random.split(key)

    B, s_dim, a_dim = 8, 16, 4  # small shapes consistent with Net(s_dim, a_dim)
    x = jax.random.normal(k_x, (B, s_dim), dtype=jnp.float32)
    params = init_params(k_p, s_dim, a_dim)

    mu, sigma, values = net_forward(x, params)
    jax.block_until_ready((mu, sigma, values))

    # sanity check against pure-JAX reference
    mu_r, sg_r, v_r = net_forward_ref(x, params)
    assert mu.shape == (B, a_dim) and sigma.shape == (B, a_dim) and values.shape == (B, 1)
    assert jnp.allclose(mu, mu_r, atol=2e-5), "mu mismatch"
    assert jnp.allclose(sigma, sg_r, atol=2e-5), "sigma mismatch"
    assert jnp.allclose(values, v_r, atol=2e-5), "values mismatch"

    print("KERNEL_OK")
</pallas_src>

<mosaic_0001>
module attributes {stable_mosaic.version = 11 : i64} {
  func.func @_net_kernel(%arg0: i32, %arg1: memref<8x16xf32, #tpu.memory_space<vmem>>, %arg2: memref<16x384xf32, #tpu.memory_space<vmem>>, %arg3: memref<1x384xf32, #tpu.memory_space<vmem>>, %arg4: memref<384x128xf32, #tpu.memory_space<vmem>>, %arg5: memref<1x128xf32, #tpu.memory_space<vmem>>, %arg6: memref<8x128xf32, #tpu.memory_space<vmem>>) attributes {dimension_semantics = [#tpu.dimension_semantics<parallel>], iteration_bounds = array<i64: 1>, scalar_prefetch = 0 : i64, scratch_operands = 0 : i64, tpu.core_type = #tpu.core_type<tc>, window_params = [{transform_indices = @transform_0, window_bounds = array<i64: 8, 16>}, {pipeline_mode = #tpu.pipeline_mode<synchronous>, transform_indices = @transform_1, window_bounds = array<i64: 16, 384>}, {pipeline_mode = #tpu.pipeline_mode<synchronous>, transform_indices = @transform_2, window_bounds = array<i64: 1, 384>}, {pipeline_mode = #tpu.pipeline_mode<synchronous>, transform_indices = @transform_3, window_bounds = array<i64: 384, 128>}, {pipeline_mode = #tpu.pipeline_mode<synchronous>, transform_indices = @transform_4, window_bounds = array<i64: 1, 128>}, {transform_indices = @transform_5, window_bounds = array<i64: 8, 128>}]} {
    %c0 = arith.constant 0 : index
    %c0_0 = arith.constant 0 : index
    %0 = vector.load %arg1[%c0, %c0_0] : memref<8x16xf32, #tpu.memory_space<vmem>>, vector<8x16xf32>
    %c0_1 = arith.constant 0 : index
    %c0_2 = arith.constant 0 : index
    %1 = vector.load %arg2[%c0_1, %c0_2] : memref<16x384xf32, #tpu.memory_space<vmem>>, vector<16x384xf32>
    %cst = arith.constant dense<0.000000e+00> : vector<8x384xf32>
    %2 = tpu.matmul %0, %1, %cst {dimension_numbers = #tpu.dot_dimension_numbers<[1], [0], [0], [1], [0, 0, 1, 1], [], []>} : vector<8x16xf32>, vector<16x384xf32>, vector<8x384xf32> -> vector<8x384xf32>
    %c0_3 = arith.constant 0 : index
    %c0_4 = arith.constant 0 : index
    %3 = vector.load %arg3[%c0_3, %c0_4] : memref<1x384xf32, #tpu.memory_space<vmem>>, vector<1x384xf32>
    %4 = vector.broadcast %3 : vector<1x384xf32> to vector<8x384xf32>
    %5 = arith.addf %2, %4 : vector<8x384xf32>
    %cst_5 = arith.constant 0.000000e+00 : f32
    %cst_6 = arith.constant 6.000000e+00 : f32
    %6 = vector.broadcast %cst_5 : f32 to vector<8x384xf32>
    %7 = arith.maximumf %6, %5 : vector<8x384xf32>
    %8 = vector.broadcast %cst_6 : f32 to vector<8x384xf32>
    %9 = arith.minimumf %8, %7 : vector<8x384xf32>
    %c0_7 = arith.constant 0 : index
    %c0_8 = arith.constant 0 : index
    %10 = vector.load %arg4[%c0_7, %c0_8] : memref<384x128xf32, #tpu.memory_space<vmem>>, vector<384x128xf32>
    %cst_9 = arith.constant dense<0.000000e+00> : vector<8x128xf32>
    %11 = tpu.matmul %9, %10, %cst_9 {dimension_numbers = #tpu.dot_dimension_numbers<[1], [0], [0], [1], [0, 0, 1, 1], [], []>} : vector<8x384xf32>, vector<384x128xf32>, vector<8x128xf32> -> vector<8x128xf32>
    %c0_10 = arith.constant 0 : index
    %c0_11 = arith.constant 0 : index
    %12 = vector.load %arg5[%c0_10, %c0_11] : memref<1x128xf32, #tpu.memory_space<vmem>>, vector<1x128xf32>
    %13 = vector.broadcast %12 : vector<1x128xf32> to vector<8x128xf32>
    %14 = arith.addf %11, %13 : vector<8x128xf32>
    %15 = tpu.iota {dimensions = array<i32: 1>} : vector<8x128xi32>
    %16 = math.tanh %14 : vector<8x128xf32>
    %cst_12 = arith.constant 2.000000e+00 : f32
    %17 = vector.broadcast %cst_12 : f32 to vector<8x128xf32>
    %18 = arith.mulf %17, %16 : vector<8x128xf32>
    %cst_13 = arith.constant 0.000000e+00 : f32
    %19 = vector.broadcast %cst_13 : f32 to vector<8x128xf32>
    %20 = arith.maximumf %14, %19 : vector<8x128xf32>
    %21 = math.absf %14 : vector<8x128xf32>
    %cst_14 = arith.constant 0.000000e+00 : f32
    %22 = vector.broadcast %cst_14 : f32 to vector<8x128xf32>
    %23 = arith.subf %22, %21 : vector<8x128xf32>
    %24 = math.exp %23 : vector<8x128xf32>
    %25 = math.log1p %24 : vector<8x128xf32>
    %26 = arith.addf %20, %25 : vector<8x128xf32>
    %cst_15 = arith.constant 1.000000e-03 : f32
    %27 = vector.broadcast %cst_15 : f32 to vector<8x128xf32>
    %28 = arith.addf %26, %27 : vector<8x128xf32>
    %c4_i32 = arith.constant 4 : i32
    %29 = vector.broadcast %c4_i32 : i32 to vector<8x128xi32>
    %30 = arith.cmpi slt, %15, %29 : vector<8x128xi32>
    %c8_i32 = arith.constant 8 : i32
    %31 = vector.broadcast %c8_i32 : i32 to vector<8x128xi32>
    %32 = arith.cmpi slt, %15, %31 : vector<8x128xi32>
    %33 = arith.select %32, %28, %14 : vector<8x128xi1>, vector<8x128xf32>
    %34 = arith.select %30, %18, %33 : vector<8x128xi1>, vector<8x128xf32>
    %c0_16 = arith.constant 0 : index
    %c0_17 = arith.constant 0 : index
    %35 = vector.load %arg6[%c0_16, %c0_17] : memref<8x128xf32, #tpu.memory_space<vmem>>, vector<8x128xf32>
    tpu.vector_store %arg6[%c0_16, %c0_17], %34 {strides = array<i32>} : memref<8x128xf32, #tpu.memory_space<vmem>>, vector<8x128xf32>,
    return
  }
  func.func @transform_0(%arg0: i32) -> (i32, i32) {
    %c0_i32 = arith.constant 0 : i32
    %c0_i32_0 = arith.constant 0 : i32
    return %arg0, %c0_i32 : i32, i32
  }
  func.func @transform_1(%arg0: i32) -> (i32, i32) {
    %c0_i32 = arith.constant 0 : i32
    %c0_i32_0 = arith.constant 0 : i32
    %c0_i32_1 = arith.constant 0 : i32
    return %c0_i32, %c0_i32_0 : i32, i32
  }
  func.func @transform_2(%arg0: i32) -> (i32, i32) {
    %c0_i32 = arith.constant 0 : i32
    %c0_i32_0 = arith.constant 0 : i32
    %c0_i32_1 = arith.constant 0 : i32
    return %c0_i32, %c0_i32_0 : i32, i32
  }
  func.func @transform_3(%arg0: i32) -> (i32, i32) {
    %c0_i32 = arith.constant 0 : i32
    %c0_i32_0 = arith.constant 0 : i32
    %c0_i32_1 = arith.constant 0 : i32
    return %c0_i32, %c0_i32_0 : i32, i32
  }
  func.func @transform_4(%arg0: i32) -> (i32, i32) {
    %c0_i32 = arith.constant 0 : i32
    %c0_i32_0 = arith.constant 0 : i32
    %c0_i32_1 = arith.constant 0 : i32
    return %c0_i32, %c0_i32_0 : i32, i32
  }
  func.func @transform_5(%arg0: i32) -> (i32, i32) {
    %c0_i32 = arith.constant 0 : i32
    %c0_i32_0 = arith.constant 0 : i32
    return %arg0, %c0_i32 : i32, i32
  }
}

</mosaic_0001>

<llo_original>
// kernel: tpu_custom_call.1
$region0: #{tpu_custom_call.1}
  #allocation0 [shape = 'u32[]', space=smem, size = 0x4, offset = 0x4, fixed_abs, tag = 'smem constant byte address 0x4 - core index']
  #allocation1 [shape = 'u32[144,128]{1,0:T(1,128)}', space=vmem, size = 0x12000, scoped, tag = 'internal scratch']
  %s0 = inlined_call_operand.hbm [shape: f32[8,16], index: 0, kind: input, shape index: {}]
  %s1 = inlined_call_operand.hbm [shape: f32[16,384], index: 1, kind: input, shape index: {}]
  %s2 = inlined_call_operand.vmem [shape: f32[1,384], index: 2, kind: input, shape index: {}]
  %s3 = inlined_call_operand.hbm [shape: f32[384,128], index: 3, kind: input, shape index: {}]
  %s4 = inlined_call_operand.vmem [shape: f32[1,128], index: 4, kind: input, shape index: {}]
  %s5 = inlined_call_operand.hbm [shape: f32[8,128], index: 5, kind: output, shape index: {}]
  %s6 = sld [smem:[#allocation0]]
  $region42: #{tpu_custom_call.1} parent=0
    _
  %s8 = ssub.s32 1, %s6
  %s9 = scalar_select 0, %s8, %s6
  $region1: #{tpu_custom_call.1} parent=0
    #allocation2 [shape = 'u8[4096]{0}', space=vmem, size = 0x1000, scoped, tag = 'input window, operand 0, single buffered']
    #allocation3 [shape = 's32[1]{0}', space=sflag, size = 0x4, scoped, tag = 'scoped memory for tpu_custom_call.1']
    #allocation4 [shape = 's32[1]{0}', space=sflag, size = 0x4, scoped, tag = 'scoped memory for tpu_custom_call.1']
    #allocation5 [shape = 'u8[24576]{0}', space=vmem, size = 0x6000, scoped, tag = 'input window, operand 1, single buffered']
    #allocation6 [shape = 's32[1]{0}', space=sflag, size = 0x4, scoped, tag = 'scoped memory for tpu_custom_call.1']
    #allocation7 [shape = 'u8[196608]{0}', space=vmem, size = 0x30000, scoped, tag = 'input window, operand 3, single buffered']
    #allocation8 [shape = 'u8[4096]{0}', space=vmem, size = 0x1000, scoped, tag = 'output window, operand 0, single buffered']
    %10 = vsyncpa [#allocation3], 0
    %11 = vsyncpa [#allocation6], 0
    %12 = vsyncpa [#allocation4], 0
    // Predicated region
    $region2: #{tpu_custom_call.1} parent=1 // pred_check
      _
    $region3: #{tpu_custom_call.1} parent=1 // pred_check_branch
      %14 = sbr.rel (0) target = $region5
    $region4: #{tpu_custom_call.1} parent=1 // pred_region
      %s16 = ssub.s32 128, 128
      %17 = vsyncadd [#allocation3], %s16
      %s19 = sshll.u32 [#allocation2], 4
      %s20 = int_to_ptr.vmem [resolvable:$true] %s19
      %22 = dma.hbm_to_vmem [thread:$0]  %s0, 128, %s20, [#allocation3]
    $region5: #{tpu_custom_call.1} parent=1 // pred_fallthru
      _
    // Predicated region
    $region6: #{tpu_custom_call.1} parent=1 // pred_check
      _
    $region7: #{tpu_custom_call.1} parent=1 // pred_check_branch
      %24 = sbr.rel (0) target = $region9
    $region8: #{tpu_custom_call.1} parent=1 // pred_region
      %s26 = ssub.s32 768, 768
      %27 = vsyncadd [#allocation6], %s26
      %s28 = sshll.u32 [#allocation5], 4
      %s29 = int_to_ptr.vmem [resolvable:$true] %s28
      %34 = dma.hbm_to_vmem [thread:$0]  %s1, 768, %s29, [#allocation6], 384, 384, 24
    $region9: #{tpu_custom_call.1} parent=1 // pred_fallthru
      _
    // Predicated region
    $region10: #{tpu_custom_call.1} parent=1 // pred_check
      _
    $region11: #{tpu_custom_call.1} parent=1 // pred_check_branch
      %36 = sbr.rel (0) target = $region13
    $region12: #{tpu_custom_call.1} parent=1 // pred_region
      _
    $region13: #{tpu_custom_call.1} parent=1 // pred_fallthru
      _
    // Predicated region
    $region14: #{tpu_custom_call.1} parent=1 // pred_check
      _
    $region15: #{tpu_custom_call.1} parent=1 // pred_check_branch
      %38 = sbr.rel (0) target = $region17
    $region16: #{tpu_custom_call.1} parent=1 // pred_region
      %s40 = ssub.s32 6144, 6144
      %41 = vsyncadd [#allocation6], %s40
      %s42 = sshll.u32 [#allocation7], 4
      %s43 = int_to_ptr.vmem [resolvable:$true] %s42
      %48 = dma.hbm_to_vmem [thread:$0]  %s3, 6144, %s43, [#allocation6], 128, 128, 8
    $region17: #{tpu_custom_call.1} parent=1 // pred_fallthru
      _
    // Predicated region
    $region18: #{tpu_custom_call.1} parent=1 // pred_check
      _
    $region19: #{tpu_custom_call.1} parent=1 // pred_check_branch
      %50 = sbr.rel (0) target = $region21
    $region20: #{tpu_custom_call.1} parent=1 // pred_region
      _
    $region21: #{tpu_custom_call.1} parent=1 // pred_fallthru
      _
    // Predicated region
    $region22: #{tpu_custom_call.1} parent=1 // pred_check
      _
    $region23: #{tpu_custom_call.1} parent=1 // pred_check_branch
      %52 = sbr.rel (0) target = $region25
    $region24: #{tpu_custom_call.1} parent=1 // pred_region
      %53 = dma.done [#allocation3], 128
    $region25: #{tpu_custom_call.1} parent=1 // pred_fallthru
      _
    // Predicated region
    $region26: #{tpu_custom_call.1} parent=1 // pred_check
      _
    $region27: #{tpu_custom_call.1} parent=1 // pred_check_branch
      %55 = sbr.rel (0) target = $region29
    $region28: #{tpu_custom_call.1} parent=1 // pred_region
      %56 = dma.done [#allocation6], 768
    $region29: #{tpu_custom_call.1} parent=1 // pred_fallthru
      _
    // Predicated region
    $region30: #{tpu_custom_call.1} parent=1 // pred_check
      _
    $region31: #{tpu_custom_call.1} parent=1 // pred_check_branch
      %58 = sbr.rel (0) target = $region33
    $region32: #{tpu_custom_call.1} parent=1 // pred_region
      %59 = dma.done [#allocation6], 6144
    $region33: #{tpu_custom_call.1} parent=1 // pred_fallthru
      _
    %v60 = vld [vmem:[#allocation2] sm:$0xff]
    %v61 = vld [vmem:[#allocation5] sm:$0xff]
    %v62 = vld [vmem:[#allocation5 + $0x8] sm:$0xff]
    %v63 = vld [vmem:[#allocation5 + $0x10] sm:$0xff]
    %v64 = vld [vmem:[#allocation5 + $0x18] sm:$0xff]
    %v65 = vld [vmem:[#allocation5 + $0x20] sm:$0xff]
    %v66 = vld [vmem:[#allocation5 + $0x28] sm:$0xff]
    %v67 = vld [vmem:[%s2] sm:$0x7]
    %v69 = vlaneseq
    %v70 = vshrl.u32 %v69, 7
    %v71 = vsub.s32 0, %v70
    %v72 = vrot.slane %v67, %v71
    %v73 = vlaneseq
    %v74 = vshrl.u32 %v73, 7
    %v75 = vsub.s32 1, %v74
    %v76 = vrot.slane %v67, %v75
    %v77 = vlaneseq
    %v78 = vshrl.u32 %v77, 7
    %v79 = vsub.s32 2, %v78
    %v80 = vrot.slane %v67, %v79
    %vm84 = vcmask 130048
    %v86 = vsel %vm84, %v60, 0
    %88 = vmatprep.subr.mxu0 %v62
    %89 = vmatpush1.msra.mxu0 %v61
    %90 = vmatprep.subr.mxu0 %v65
    %91 = vmatpush1.msra.mxu0 %v64
    %92 = vmatprep.subr.mxu0 0.0
    %93 = vmatpush1.msra.mxu0 0.0
    %94 = vmatprep.subr.mxu0 0.0
    %95 = vmatpush1.msra.mxu0 0.0
    %96 = vmatprep.subr.mxu0 0.0
    %97 = vmatpush1.msra.mxu0 0.0
    %98 = vmatprep.subr.mxu0 0.0
    %99 = vmatpush1.msra.mxu0 0.0
    %100 = vmatprep.subr.mxu0 0.0
    %101 = vmatpush1.msra.mxu0 0.0
    %102 = vmatprep.subr.mxu0 0.0
    %103 = vmatpush1.msra.mxu0 0.0
    %104 = vmatprep.subr.mxu0 0.0
    %105 = vmatpush1.msra.mxu0 0.0
    %106 = vmatprep.subr.mxu0 0.0
    %107 = vmatpush1.msra.mxu0 0.0
    %108 = vmatprep.subr.mxu0 0.0
    %109 = vmatpush1.msra.mxu0 0.0
    %110 = vmatprep.subr.mxu0 0.0
    %111 = vmatpush1.msra.mxu0 0.0
    %112 = vmatprep.subr.mxu0 0.0
    %113 = vmatpush1.msra.mxu0 0.0
    %114 = vmatprep.subr.mxu0 0.0
    %115 = vmatpush1.msra.mxu0 0.0
    %116 = vmatprep.subr.mxu0 0.0
    %117 = vmatpush1.msra.mxu0 0.0
    %118 = vmatprep.subr.mxu0 0.0
    %119 = vmatpush1.msra.mxu0 0.0
    %120 = vmatprep.subr.mxu0 0.0
    %121 = vmatpush1.msra.mxu0 0.0
    %122 = vmatprep.subr.mxu0 0.0
    %123 = vmatpush1.msra.mxu0 0.0
    %124 = vmatprep.subr.mxu0 0.0
    %125 = vmatpush1.msra.mxu0 0.0
    %126 = vmatprep.subr.mxu0 0.0
    %127 = vmatpush1.msra.mxu0 0.0
    %128 = vmatprep.subr.mxu0 0.0
    %129 = vmatpush1.msra.mxu0 0.0
    %130 = vmatprep.subr.mxu0 0.0
    %131 = vmatpush1.msra.mxu0 0.0
    %132 = vmatprep.subr.mxu0 0.0
    %133 = vmatpush1.msra.mxu0 0.0
    %134 = vmatprep.subr.mxu0 0.0
    %135 = vmatpush1.msra.mxu0 0.0
    %136 = vmatprep.subr.mxu0 0.0
    %137 = vmatpush1.msra.mxu0 0.0
    %138 = vmatprep.subr.mxu0 0.0
    %139 = vmatpush1.msra.mxu0 0.0
    %140 = vmatprep.subr.mxu0 0.0
    %141 = vmatpush1.msra.mxu0 0.0
    %142 = vmatprep.subr.mxu0 0.0
    %143 = vmatpush1.msra.mxu0 0.0
    %144 = vmatprep.subr.mxu0 0.0
    %145 = vmatpush1.msra.mxu0 0.0
    %146 = vmatprep.subr.mxu0 0.0
    %147 = vmatpush1.msra.mxu0 0.0
    %148 = vmatprep.subr.mxu0 0.0
    %149 = vmatpush1.msra.mxu0 0.0
    %150 = vmatprep.subr.mxu0 0.0
    %151 = vmatpush1.msra.mxu0 0.0
    %152 = vmatprep.mubr.f32.mxu0 0.0
    %153 = vmatmul.mubr.f32.gmra.mrb[0].mxu0 %v86
    %v154 = vpop.f32.mrb[0].mxu0
    %v155 = vadd.f32 %v72, %v154
    %v156 = vpop.f32.mrb[0].mxu0
    %v157 = vadd.f32 %v76, %v156
    %158 = vdwg.mxu0
    %159 = vmatprep.subr.mxu0 0.0
    %160 = vmatpush1.msra.mxu0 %v63
    %161 = vmatprep.subr.mxu0 0.0
    %162 = vmatpush1.msra.mxu0 %v66
    %163 = vmatprep.subr.mxu0 0.0
    %164 = vmatpush1.msra.mxu0 0.0
    %165 = vmatprep.subr.mxu0 0.0
    %166 = vmatpush1.msra.mxu0 0.0
    %167 = vmatprep.subr.mxu0 0.0
    %168 = vmatpush1.msra.mxu0 0.0
    %169 = vmatprep.subr.mxu0 0.0
    %170 = vmatpush1.msra.mxu0 0.0
    %171 = vmatprep.subr.mxu0 0.0
    %172 = vmatpush1.msra.mxu0 0.0
    %173 = vmatprep.subr.mxu0 0.0
    %174 = vmatpush1.msra.mxu0 0.0
    %175 = vmatprep.subr.mxu0 0.0
    %176 = vmatpush1.msra.mxu0 0.0
    %177 = vmatprep.subr.mxu0 0.0
    %178 = vmatpush1.msra.mxu0 0.0
    %179 = vmatprep.subr.mxu0 0.0
    %180 = vmatpush1.msra.mxu0 0.0
    %181 = vmatprep.subr.mxu0 0.0
    %182 = vmatpush1.msra.mxu0 0.0
    %183 = vmatprep.subr.mxu0 0.0
    %184 = vmatpush1.msra.mxu0 0.0
    %185 = vmatprep.subr.mxu0 0.0
    %186 = vmatpush1.msra.mxu0 0.0
    %187 = vmatprep.subr.mxu0 0.0
    %188 = vmatpush1.msra.mxu0 0.0
    %189 = vmatprep.subr.mxu0 0.0
    %190 = vmatpush1.msra.mxu0 0.0
    %191 = vmatprep.subr.mxu0 0.0
    %192 = vmatpush1.msra.mxu0 0.0
    %193 = vmatprep.subr.mxu0 0.0
    %194 = vmatpush1.msra.mxu0 0.0
    %195 = vmatprep.subr.mxu0 0.0
    %196 = vmatpush1.msra.mxu0 0.0
    %197 = vmatprep.subr.mxu0 0.0
    %198 = vmatpush1.msra.mxu0 0.0
    %199 = vmatprep.subr.mxu0 0.0
    %200 = vmatpush1.msra.mxu0 0.0
    %201 = vmatprep.subr.mxu0 0.0
    %202 = vmatpush1.msra.mxu0 0.0
    %203 = vmatprep.subr.mxu0 0.0
    %204 = vmatpush1.msra.mxu0 0.0
    %205 = vmatprep.subr.mxu0 0.0
    %206 = vmatpush1.msra.mxu0 0.0
    %207 = vmatprep.subr.mxu0 0.0
    %208 = vmatpush1.msra.mxu0 0.0
    %209 = vmatprep.subr.mxu0 0.0
    %210 = vmatpush1.msra.mxu0 0.0
    %211 = vmatprep.subr.mxu0 0.0
    %212 = vmatpush1.msra.mxu0 0.0
    %213 = vmatprep.subr.mxu0 0.0
    %214 = vmatpush1.msra.mxu0 0.0
    %215 = vmatprep.subr.mxu0 0.0
    %216 = vmatpush1.msra.mxu0 0.0
    %217 = vmatprep.subr.mxu0 0.0
    %218 = vmatpush1.msra.mxu0 0.0
    %219 = vmatprep.subr.mxu0 0.0
    %220 = vmatpush1.msra.mxu0 0.0
    %221 = vmatprep.subr.mxu0 0.0
    %222 = vmatpush1.msra.mxu0 0.0
    %223 = vmatprep.mubr.f32.mxu0 0.0
    %224 = vmatmul.mubr.f32.gmra.mrb[0].mxu0 %v86
    %v225 = vpop.f32.mrb[0].mxu0
    %v226 = vadd.f32 %v80, %v225
    %v227 = vpop.f32.mrb[0].mxu0
    %228 = vdwg.mxu0
    %v229 = vmax.f32 %v155, 0.0
    %v230 = vmax.f32 %v157, 0.0
    %v231 = vmax.f32 %v226, 0.0
    %v232 = vmin.f32 %v229, 6.0
    %v233 = vmin.f32 %v230, 6.0
    %v234 = vmin.f32 %v231, 6.0
    %v235 = vld [vmem:[#allocation7] sm:$0xff]
    %v236 = vld [vmem:[#allocation7 + $0x8] sm:$0xff]
    %v237 = vld [vmem:[#allocation7 + $0x10] sm:$0xff]
    %v238 = vld [vmem:[#allocation7 + $0x18] sm:$0xff]
    %v239 = vld [vmem:[#allocation7 + $0x20] sm:$0xff]
    %v240 = vld [vmem:[#allocation7 + $0x28] sm:$0xff]
    %v241 = vld [vmem:[#allocation7 + $0x30] sm:$0xff]
    %v242 = vld [vmem:[#allocation7 + $0x38] sm:$0xff]
    %v243 = vld [vmem:[#allocation7 + $0x40] sm:$0xff]
    %v244 = vld [vmem:[#allocation7 + $0x48] sm:$0xff]
    %v245 = vld [vmem:[#allocation7 + $0x50] sm:$0xff]
    %v246 = vld [vmem:[#allocation7 + $0x58] sm:$0xff]
    %v247 = vld [vmem:[#allocation7 + $0x60] sm:$0xff]
    %v248 = vld [vmem:[#allocation7 + $0x68] sm:$0xff]
    %v249 = vld [vmem:[#allocation7 + $0x70] sm:$0xff]
    %v250 = vld [vmem:[#allocation7 + $0x78] sm:$0xff]
    %v251 = vld [vmem:[#allocation7 + $0x80] sm:$0xff]
    %v252 = vld [vmem:[#allocation7 + $0x88] sm:$0xff]
    %v253 = vld [vmem:[#allocation7 + $0x90] sm:$0xff]
    %v254 = vld [vmem:[#allocation7 + $0x98] sm:$0xff]
    %v255 = vld [vmem:[#allocation7 + $0xa0] sm:$0xff]
    %v256 = vld [vmem:[#allocation7 + $0xa8] sm:$0xff]
    %v257 = vld [vmem:[#allocation7 + $0xb0] sm:$0xff]
    %v258 = vld [vmem:[#allocation7 + $0xb8] sm:$0xff]
    %v259 = vld [vmem:[#allocation7 + $0xc0] sm:$0xff]
    %v260 = vld [vmem:[#allocation7 + $0xc8] sm:$0xff]
    %v261 = vld [vmem:[#allocation7 + $0xd0] sm:$0xff]
    %v262 = vld [vmem:[#allocation7 + $0xd8] sm:$0xff]
    %v263 = vld [vmem:[#allocation7 + $0xe0] sm:$0xff]
    %v264 = vld [vmem:[#allocation7 + $0xe8] sm:$0xff]
    %v265 = vld [vmem:[#allocation7 + $0xf0] sm:$0xff]
    %v266 = vld [vmem:[#allocation7 + $0xf8] sm:$0xff]
    %v267 = vld [vmem:[#allocation7 + $0x100] sm:$0xff]
    %v268 = vld [vmem:[#allocation7 + $0x108] sm:$0xff]
    %v269 = vld [vmem:[#allocation7 + $0x110] sm:$0xff]
    %v270 = vld [vmem:[#allocation7 + $0x118] sm:$0xff]
    %v271 = vld [vmem:[#allocation7 + $0x120] sm:$0xff]
    %v272 = vld [vmem:[#allocation7 + $0x128] sm:$0xff]
    %v273 = vld [vmem:[#allocation7 + $0x130] sm:$0xff]
    %v274 = vld [vmem:[#allocation7 + $0x138] sm:$0xff]
    %v275 = vld [vmem:[#allocation7 + $0x140] sm:$0xff]
    %v276 = vld [vmem:[#allocation7 + $0x148] sm:$0xff]
    %v277 = vld [vmem:[#allocation7 + $0x150] sm:$0xff]
    %v278 = vld [vmem:[#allocation7 + $0x158] sm:$0xff]
    %v279 = vld [vmem:[#allocation7 + $0x160] sm:$0xff]
    %v280 = vld [vmem:[#allocation7 + $0x168] sm:$0xff]
    %v281 = vld [vmem:[#allocation7 + $0x170] sm:$0xff]
    %v282 = vld [vmem:[#allocation7 + $0x178] sm:$0xff]
    %v283 = vld [vmem:[%s4] sm:$0x1]
    %v285 = vlaneseq
    %v286 = vshrl.u32 %v285, 7
    %v287 = vsub.s32 0, %v286
    %v288 = vrot.slane %v283, %v287
    %290 = vmatprep.subr.mxu0 0.0
    %291 = vmatpush1.msra.mxu0 %v235
    %292 = vmatprep.subr.mxu0 0.0
    %293 = vmatpush1.msra.mxu0 %v236
    %294 = vmatprep.subr.mxu0 0.0
    %295 = vmatpush1.msra.mxu0 %v237
    %296 = vmatprep.subr.mxu0 0.0
    %297 = vmatpush1.msra.mxu0 %v238
    %298 = vmatprep.subr.mxu0 0.0
    %299 = vmatpush1.msra.mxu0 %v239
    %300 = vmatprep.subr.mxu0 0.0
    %301 = vmatpush1.msra.mxu0 %v240
    %302 = vmatprep.subr.mxu0 0.0
    %303 = vmatpush1.msra.mxu0 %v241
    %304 = vmatprep.subr.mxu0 0.0
    %305 = vmatpush1.msra.mxu0 %v242
    %306 = vmatprep.subr.mxu0 0.0
    %307 = vmatpush1.msra.mxu0 %v243
    %308 = vmatprep.subr.mxu0 0.0
    %309 = vmatpush1.msra.mxu0 %v244
    %310 = vmatprep.subr.mxu0 0.0
    %311 = vmatpush1.msra.mxu0 %v245
    %312 = vmatprep.subr.mxu0 0.0
    %313 = vmatpush1.msra.mxu0 %v246
    %314 = vmatprep.subr.mxu0 0.0
    %315 = vmatpush1.msra.mxu0 %v247
    %316 = vmatprep.subr.mxu0 0.0
    %317 = vmatpush1.msra.mxu0 %v248
    %318 = vmatprep.subr.mxu0 0.0
    %319 = vmatpush1.msra.mxu0 %v249
    %320 = vmatprep.subr.mxu0 0.0
    %321 = vmatpush1.msra.mxu0 %v250
    %322 = vmatprep.subr.mxu0 0.0
    %323 = vmatpush1.msra.mxu0 %v251
    %324 = vmatprep.subr.mxu0 0.0
    %325 = vmatpush1.msra.mxu0 %v252
    %326 = vmatprep.subr.mxu0 0.0
    %327 = vmatpush1.msra.mxu0 %v253
    %328 = vmatprep.subr.mxu0 0.0
    %329 = vmatpush1.msra.mxu0 %v254
    %330 = vmatprep.subr.mxu0 0.0
    %331 = vmatpush1.msra.mxu0 %v255
    %332 = vmatprep.subr.mxu0 0.0
    %333 = vmatpush1.msra.mxu0 %v256
    %334 = vmatprep.subr.mxu0 0.0
    %335 = vmatpush1.msra.mxu0 %v257
    %336 = vmatprep.subr.mxu0 0.0
    %337 = vmatpush1.msra.mxu0 %v258
    %338 = vmatprep.subr.mxu0 0.0
    %339 = vmatpush1.msra.mxu0 %v259
    %340 = vmatprep.subr.mxu0 0.0
    %341 = vmatpush1.msra.mxu0 %v260
    %342 = vmatprep.subr.mxu0 0.0
    %343 = vmatpush1.msra.mxu0 %v261
    %344 = vmatprep.subr.mxu0 0.0
    %345 = vmatpush1.msra.mxu0 %v262
    %346 = vmatprep.subr.mxu0 0.0
    %347 = vmatpush1.msra.mxu0 %v263
    %348 = vmatprep.subr.mxu0 0.0
    %349 = vmatpush1.msra.mxu0 %v264
    %350 = vmatprep.subr.mxu0 0.0
    %351 = vmatpush1.msra.mxu0 %v265
    %352 = vmatprep.subr.mxu0 0.0
    %353 = vmatpush1.msra.mxu0 %v266
    %354 = vmatprep.mubr.f32.mxu0 %v233
    %355 = vmatmul.mubr.f32.gmra.mrb[0].mxu0 %v232
    %v356 = vpop.f32.mrb[0].mxu0
    %v357 = vadd.f32 %v288, %v356
    %v358 = vpop.f32.mrb[0].mxu0
    %359 = vdwg.mxu0
    %360 = vmatprep.subr.mxu0 0.0
    %361 = vmatpush1.msra.mxu0 %v267
    %362 = vmatprep.subr.mxu0 0.0
    %363 = vmatpush1.msra.mxu0 %v268
    %364 = vmatprep.subr.mxu0 0.0
    %365 = vmatpush1.msra.mxu0 %v269
    %366 = vmatprep.subr.mxu0 0.0
    %367 = vmatpush1.msra.mxu0 %v270
    %368 = vmatprep.subr.mxu0 0.0
    %369 = vmatpush1.msra.mxu0 %v271
    %370 = vmatprep.subr.mxu0 0.0
    %371 = vmatpush1.msra.mxu0 %v272
    %372 = vmatprep.subr.mxu0 0.0
    %373 = vmatpush1.msra.mxu0 %v273
    %374 = vmatprep.subr.mxu0 0.0
    %375 = vmatpush1.msra.mxu0 %v274
    %376 = vmatprep.subr.mxu0 0.0
    %377 = vmatpush1.msra.mxu0 %v275
    %378 = vmatprep.subr.mxu0 0.0
    %379 = vmatpush1.msra.mxu0 %v276
    %380 = vmatprep.subr.mxu0 0.0
    %381 = vmatpush1.msra.mxu0 %v277
    %382 = vmatprep.subr.mxu0 0.0
    %383 = vmatpush1.msra.mxu0 %v278
    %384 = vmatprep.subr.mxu0 0.0
    %385 = vmatpush1.msra.mxu0 %v279
    %386 = vmatprep.subr.mxu0 0.0
    %387 = vmatpush1.msra.mxu0 %v280
    %388 = vmatprep.subr.mxu0 0.0
    %389 = vmatpush1.msra.mxu0 %v281
    %390 = vmatprep.subr.mxu0 0.0
    %391 = vmatpush1.msra.mxu0 %v282
    %392 = vmatprep.subr.mxu0 0.0
    %393 = vmatpush1.msra.mxu0 0.0
    %394 = vmatprep.subr.mxu0 0.0
    %395 = vmatpush1.msra.mxu0 0.0
    %396 = vmatprep.subr.mxu0 0.0
    %397 = vmatpush1.msra.mxu0 0.0
    %398 = vmatprep.subr.mxu0 0.0
    %399 = vmatpush1.msra.mxu0 0.0
    %400 = vmatprep.subr.mxu0 0.0
    %401 = vmatpush1.msra.mxu0 0.0
    %402 = vmatprep.subr.mxu0 0.0
    %403 = vmatpush1.msra.mxu0 0.0
    %404 = vmatprep.subr.mxu0 0.0
    %405 = vmatpush1.msra.mxu0 0.0
    %406 = vmatprep.subr.mxu0 0.0
    %407 = vmatpush1.msra.mxu0 0.0
    %408 = vmatprep.subr.mxu0 0.0
    %409 = vmatpush1.msra.mxu0 0.0
    %410 = vmatprep.subr.mxu0 0.0
    %411 = vmatpush1.msra.mxu0 0.0
    %412 = vmatprep.subr.mxu0 0.0
    %413 = vmatpush1.msra.mxu0 0.0
    %414 = vmatprep.subr.mxu0 0.0
    %415 = vmatpush1.msra.mxu0 0.0
    %416 = vmatprep.subr.mxu0 0.0
    %417 = vmatpush1.msra.mxu0 0.0
    %418 = vmatprep.subr.mxu0 0.0
    %419 = vmatpush1.msra.mxu0 0.0
    %420 = vmatprep.subr.mxu0 0.0
    %421 = vmatpush1.msra.mxu0 0.0
    %422 = vmatprep.subr.mxu0 0.0
    %423 = vmatpush1.msra.mxu0 0.0
    %424 = vmatprep.mubr.f32.mxu0 0.0
    %425 = vmatmul.mubr.f32.gmra.mrb[0].mxu0 %v234
    %v426 = vpop.f32.mrb[0].mxu0
    %v427 = vadd.f32 %v357, %v426
    %v428 = vpop.f32.mrb[0].mxu0
    %429 = vdwg.mxu0
    %v430 = vlaneseq
    %v431 = vand.u32 %v430, 127
    %v432 = vtanh.pop %v427
    %v433 = vmul.f32 %v432, 2.0
    %v434 = vmax.f32 %v427, 0.0
    %v435 = vand.u32 2147483647, %v427
    %v436 = vsub.f32 0.0, %v435
    %v437 = vmul.f32 %v436, 1.442695
    %v438 = vpow.pop %v437
    %v439 = vadd.f32 %v438, 1.0
    %v440 = vlog2.pop %v439
    %v441 = vmul.f32 %v440, 0.6931472
    %v442 = vmul.f32 -0.5, %v438
    %v443 = vadd.f32 %v442, 1.0
    %v444 = vmul.f32 %v443, %v438
    %v445 = vand.u32 2147483647, %v438
    %vm446 = vcmp.lt.f32.partialorder %v445, 0.0004427343
    %v447 = vsel %vm446, %v444, %v441
    %v448 = vadd.f32 %v434, %v447
    %v449 = vadd.f32 %v448, 0.001
    %vm450 = vcmp.lt.s32.totalorder %v431, 4
    %vm451 = vcmp.lt.s32.totalorder %v431, 8
    %v452 = vsel %vm451, %v449, %v427
    %v453 = vsel %vm450, %v433, %v452
    %454 = vst [vmem:[#allocation8] sm:$0xff] %v453
    // Predicated region
    $region34: #{tpu_custom_call.1} parent=1 // pred_check
      _
    $region35: #{tpu_custom_call.1} parent=1 // pred_check_branch
      %456 = sbr.rel (0) target = $region37
    $region36: #{tpu_custom_call.1} parent=1 // pred_region
      %s458 = ssub.s32 128, 128
      %459 = vsyncadd [#allocation4], %s458
      %s461 = sshll.u32 [#allocation8], 4
      %s462 = int_to_ptr.vmem [resolvable:$true] %s461
      %464 = dma.vmem_to_hbm [thread:$0]  %s462, 128, %s5, [#allocation4]
    $region37: #{tpu_custom_call.1} parent=1 // pred_fallthru
      _
    // Predicated region
    $region38: #{tpu_custom_call.1} parent=1 // pred_check
      _
    $region39: #{tpu_custom_call.1} parent=1 // pred_check_branch
      %466 = sbr.rel (0) target = $region41
    $region40: #{tpu_custom_call.1} parent=1 // pred_region
      %467 = dma.done [#allocation4], 128
    $region41: #{tpu_custom_call.1} parent=1 // pred_fallthru
      _
    %468 = vsyncpa [#allocation3], 1
    %469 = vsyncpa [#allocation6], 1
    %470 = vsyncpa [#allocation4], 1

</llo_original>
